<compile_context>
chip_gen: v7x
topology: tpu7x:2x2x1
jax: 0.10.0
libtpu: 0.0.40
codegen_flags: <defaults>
</compile_context>

<pallas_src>
import math

import jax
import jax.numpy as jnp
from jax.experimental import pallas as pl
from jax.experimental.pallas import tpu as pltpu

_LANES = 128
_DEFAULT_BLOCK_BYTES = 4 * 1024 * 1024  # per-buffer logical target


def _copy_kernel(x_ref, o_ref):
    # Pure data movement: full-tile load + full-width store.
    o_ref[...] = x_ref[...]


def _resolve_shape(shape, n):
    """torch.reshape-style shape resolution (supports a single -1)."""
    shape = tuple(int(s) for s in shape)
    if shape.count(-1) > 1:
        raise ValueError("only one dimension can be -1")
    if -1 in shape:
        idx = shape.index(-1)
        rest = 1
        for s in shape[:idx] + shape[idx + 1:]:
            rest *= s
        if rest == 0 or n % rest != 0:
            raise ValueError(f"cannot reshape array of size {n} into {shape}")
        shape = shape[:idx] + (n // rest,) + shape[idx + 1:]
    if math.prod(shape) != n:
        raise ValueError(f"cannot reshape array of size {n} into {shape}")
    return shape


def reshape_pallas(x: jax.Array, shape: tuple,
                   block_bytes: int = _DEFAULT_BLOCK_BYTES) -> jax.Array:
    n = x.size
    out_shape = _resolve_shape(shape, n)
    if n == 0:
        return jnp.reshape(x, out_shape)

    itemsize = jnp.dtype(x.dtype).itemsize

    if n % _LANES == 0:
        # Lane-dense path: view the flat buffer as (rows, 128) and tile rows.
        rows, cols = n // _LANES, _LANES
        # Sublane multiple for the second-to-last block dim:
        # 8 for 32-bit, 16 for 16-bit, 32 for 8-bit packed dtypes.
        sub = max(8, 32 // max(1, itemsize))
        target_rows = max(sub, block_bytes // (_LANES * itemsize))
        target_rows = (target_rows // sub) * sub
        tile_rows, tile_cols = (rows if rows <= target_rows else target_rows), cols
        grid = (pl.cdiv(rows, tile_rows),)
    else:
        # Fallback: (1, n) view tiled along lanes in multiples of 128.
        # (1, X) blocks pad 8x along sublanes in VMEM, so divide the budget.
        rows, cols = 1, n
        if n <= _LANES:
            tile_rows, tile_cols = 1, n  # full-extent block (single step)
        else:
            target_cols = max(_LANES, (block_bytes // itemsize) // 8)
            target_cols = (target_cols // _LANES) * _LANES
            tile_rows = 1
            tile_cols = min(target_cols, (n // _LANES) * _LANES)
        grid = (pl.cdiv(cols, tile_cols),)

    x2 = jnp.reshape(x, (rows, cols))  # free: contiguous view

    if n % _LANES == 0:
        in_spec = pl.BlockSpec((tile_rows, tile_cols), lambda i: (i, 0))
        out_spec = pl.BlockSpec((tile_rows, tile_cols), lambda i: (i, 0))
    else:
        in_spec = pl.BlockSpec((tile_rows, tile_cols), lambda i: (0, i))
        out_spec = pl.BlockSpec((tile_rows, tile_cols), lambda i: (0, i))

    flat = pl.pallas_call(
        _copy_kernel,
        out_shape=jax.ShapeDtypeStruct((rows, cols), x.dtype),
        grid=grid,
        in_specs=[in_spec],
        out_specs=out_spec,
        compiler_params=pltpu.CompilerParams(
            dimension_semantics=("parallel",),
        ),
        cost_estimate=pl.CostEstimate(
            flops=0,
            transcendentals=0,
            bytes_accessed=2 * n * itemsize,
        ),
    )(x2)

    return jnp.reshape(flat, out_shape)  # free: contiguous view


class Reshape:
    """JAX/Pallas analogue of torchoutil Reshape(*shape)."""

    def __init__(self, *shape: int) -> None:
        self.shape = tuple(shape)

    def __call__(self, x: jax.Array) -> jax.Array:
        return reshape_pallas(x, self.shape)


if __name__ == "__main__":
    key = jax.random.PRNGKey(0)

    # Main case: (2, 4, 16, 16) -> (2, -1, 32); 2048 elems -> lane-dense
    # (16, 128) slab, one grid step.
    x = jax.random.normal(key, (2, 4, 16, 16), dtype=jnp.float32)
    module = Reshape(2, -1, 32)
    out = jax.block_until_ready(module(x))
    ref = jnp.reshape(x, (2, -1, 32))
    assert out.shape == ref.shape, (out.shape, ref.shape)
    assert out.dtype == ref.dtype, (out.dtype, ref.dtype)
    assert bool(jnp.array_equal(out, ref)), "Pallas reshape mismatch vs reference"

    # Fallback case: total size (105) not divisible by 128 -> single block.
    key2 = jax.random.PRNGKey(1)
    y = jax.random.normal(key2, (3, 5, 7), dtype=jnp.float32)
    out2 = jax.block_until_ready(Reshape(21, 5)(y))
    ref2 = jnp.reshape(y, (21, 5))
    assert out2.shape == ref2.shape, (out2.shape, ref2.shape)
    assert bool(jnp.array_equal(out2, ref2)), "Pallas reshape (fallback) mismatch"

    # Ragged-grid case: 520 rows of 128 with a small block budget forces a
    # cdiv grid with a masked final block (exercises the robust tiling path).
    key3 = jax.random.PRNGKey(2)
    z = jax.random.normal(key3, (1, 520, 128), dtype=jnp.float32)
    out3 = jax.block_until_ready(
        reshape_pallas(z, (520, 128), block_bytes=128 * 128 * 4))
    ref3 = jnp.reshape(z, (520, 128))
    assert bool(jnp.array_equal(out3, ref3)), "Pallas reshape (ragged) mismatch"

    # Non-aligned + tiled lane axis: 300 elems, 256-wide blocks, masked tail.
    key4 = jax.random.PRNGKey(3)
    w = jax.random.normal(key4, (300,), dtype=jnp.float32)
    out4 = jax.block_until_ready(
        reshape_pallas(w, (30, 10), block_bytes=64 * 1024))
    ref4 = jnp.reshape(w, (30, 10))
    assert bool(jnp.array_equal(out4, ref4)), "Pallas reshape (lane-ragged) mismatch"

    print("KERNEL_OK")
</pallas_src>

<mosaic_0001>
module attributes {stable_mosaic.version = 11 : i64} {
  func.func @_copy_kernel(%arg0: i32, %arg1: memref<16x128xf32, #tpu.memory_space<vmem>>, %arg2: memref<16x128xf32, #tpu.memory_space<vmem>>) attributes {dimension_semantics = [#tpu.dimension_semantics<parallel>], iteration_bounds = array<i64: 1>, scalar_prefetch = 0 : i64, scratch_operands = 0 : i64, tpu.core_type = #tpu.core_type<tc>, window_params = [{transform_indices = @transform_0, window_bounds = array<i64: 16, 128>}, {transform_indices = @transform_1, window_bounds = array<i64: 16, 128>}]} {
    %c0 = arith.constant 0 : index
    %c0_0 = arith.constant 0 : index
    %0 = vector.load %arg1[%c0, %c0_0] : memref<16x128xf32, #tpu.memory_space<vmem>>, vector<16x128xf32>
    %c0_1 = arith.constant 0 : index
    %c0_2 = arith.constant 0 : index
    %1 = vector.load %arg2[%c0_1, %c0_2] : memref<16x128xf32, #tpu.memory_space<vmem>>, vector<16x128xf32>
    tpu.vector_store %arg2[%c0_1, %c0_2], %0 {strides = array<i32>} : memref<16x128xf32, #tpu.memory_space<vmem>>, vector<16x128xf32>,
    return
  }
  func.func @transform_0(%arg0: i32) -> (i32, i32) {
    %c0_i32 = arith.constant 0 : i32
    %c0_i32_0 = arith.constant 0 : i32
    return %arg0, %c0_i32 : i32, i32
  }
  func.func @transform_1(%arg0: i32) -> (i32, i32) {
    %c0_i32 = arith.constant 0 : i32
    %c0_i32_0 = arith.constant 0 : i32
    return %arg0, %c0_i32 : i32, i32
  }
}

</mosaic_0001>

<llo_original>
// kernel: tpu_custom_call.1
$region0: #{tpu_custom_call.1}
  #allocation0 [shape = 'u32[]', space=smem, size = 0x4, offset = 0x4, fixed_abs, tag = 'smem constant byte address 0x4 - core index']
  #allocation1 [shape = 'u32[144,128]{1,0:T(1,128)}', space=vmem, size = 0x12000, scoped, tag = 'internal scratch']
  %s0 = inlined_call_operand.hbm [shape: f32[16,128], index: 0, kind: input, shape index: {}]
  %s1 = inlined_call_operand.hbm [shape: f32[16,128], index: 1, kind: output, shape index: {}]
  %s2 = sld [smem:[#allocation0]]
  $region18: #{tpu_custom_call.1} parent=0
    _
  %s4 = ssub.s32 1, %s2
  %s5 = scalar_select 0, %s4, %s2
  $region1: #{tpu_custom_call.1} parent=0
    #allocation2 [shape = 'u8[8192]{0}', space=vmem, size = 0x2000, scoped, tag = 'input window, operand 0, single buffered']
    #allocation3 [shape = 's32[1]{0}', space=sflag, size = 0x4, scoped, tag = 'scoped memory for tpu_custom_call.1']
    #allocation4 [shape = 's32[1]{0}', space=sflag, size = 0x4, scoped, tag = 'scoped memory for tpu_custom_call.1']
    #allocation5 [shape = 'u8[8192]{0}', space=vmem, size = 0x2000, scoped, tag = 'output window, operand 0, single buffered']
    %6 = vsyncpa [#allocation3], 0
    %7 = vsyncpa [#allocation4], 0
    // Predicated region
    $region2: #{tpu_custom_call.1} parent=1 // pred_check
      _
    $region3: #{tpu_custom_call.1} parent=1 // pred_check_branch
      %9 = sbr.rel (0) target = $region5
    $region4: #{tpu_custom_call.1} parent=1 // pred_region
      %s11 = ssub.s32 256, 256
      %12 = vsyncadd [#allocation3], %s11
      %s13 = sshll.u32 [#allocation2], 4
      %s14 = int_to_ptr.vmem [resolvable:$true] %s13
      %19 = dma.hbm_to_vmem [thread:$0]  %s0, 256, %s14, [#allocation3], 128, 128, 8
    $region5: #{tpu_custom_call.1} parent=1 // pred_fallthru
      _
    // Predicated region
    $region6: #{tpu_custom_call.1} parent=1 // pred_check
      _
    $region7: #{tpu_custom_call.1} parent=1 // pred_check_branch
      %21 = sbr.rel (0) target = $region9
    $region8: #{tpu_custom_call.1} parent=1 // pred_region
      %22 = dma.done [#allocation3], 256
    $region9: #{tpu_custom_call.1} parent=1 // pred_fallthru
      _
    %v23 = vld [vmem:[#allocation2] sm:$0xff]
    %v24 = vld [vmem:[#allocation2 + $0x8] sm:$0xff]
    %25 = vst [vmem:[#allocation5] sm:$0xff] %v23
    %26 = vst [vmem:[#allocation5 + $0x8] sm:$0xff] %v24
    // Predicated region
    $region10: #{tpu_custom_call.1} parent=1 // pred_check
      _
    $region11: #{tpu_custom_call.1} parent=1 // pred_check_branch
      %28 = sbr.rel (0) target = $region13
    $region12: #{tpu_custom_call.1} parent=1 // pred_region
      %s30 = ssub.s32 256, 256
      %31 = vsyncadd [#allocation4], %s30
      %s32 = sshll.u32 [#allocation5], 4
      %s33 = int_to_ptr.vmem [resolvable:$true] %s32
      %38 = dma.vmem_to_hbm [thread:$0]  %s33, 256, %s1, [#allocation4], 128, 128, 8
    $region13: #{tpu_custom_call.1} parent=1 // pred_fallthru
      _
    // Predicated region
    $region14: #{tpu_custom_call.1} parent=1 // pred_check
      _
    $region15: #{tpu_custom_call.1} parent=1 // pred_check_branch
      %40 = sbr.rel (0) target = $region17
    $region16: #{tpu_custom_call.1} parent=1 // pred_region
      %41 = dma.done [#allocation4], 256
    $region17: #{tpu_custom_call.1} parent=1 // pred_fallthru
      _
    %42 = vsyncpa [#allocation3], 1
    %43 = vsyncpa [#allocation4], 1

</llo_original>
